<compile_context>
chip_gen: v7x
topology: tpu7x:2x2x1
jax: 0.10.0
libtpu: 0.0.40
codegen_flags: <defaults>
</compile_context>

<pallas_src>
import jax
import jax.numpy as jnp
from jax.experimental import pallas as pl
from jax.experimental.pallas import tpu as pltpu

BN_EPS = 1e-5


def _wide_banded_conv_weights(w_hwio, W):
    """(3,3,Ci,Co) HWIO conv weights -> (W*Ci, 3*W*Co) wide banded matrix.

    Column block kh holds big[kh][q*Ci+ci, j*Co+co] = w[kh, q-j+1, ci, co] if
    |q-j| <= 1 else 0, so a single (M, W*Ci) @ (W*Ci, 3*W*Co) MXU matmul does
    the horizontal 3-tap conv (with zero padding along W) for all three
    vertical taps at once.
    """
    j = jnp.arange(W)
    kw = jnp.arange(3)
    # sel[kw, q, j] = 1  iff  q == j + kw - 1   (valid horizontal tap)
    sel = (j[None, :, None] == (j[None, None, :] + kw[:, None, None] - 1))
    sel = sel.astype(w_hwio.dtype)
    big = jnp.einsum('kqj,hkio->hqijo', sel, w_hwio)      # (3, W, Ci, W, Co)
    _, _, Ci, _, Co = big.shape
    big = big.reshape(3, W * Ci, W * Co)
    # (W*Ci, 3*W*Co) with lane-aligned kh blocks [kh0 | kh1 | kh2].
    return jnp.transpose(big, (1, 0, 2)).reshape(W * Ci, 3 * W * Co)


def basic_block_forward(x_nchw, w1, w2, g1, b1, g2, b2):
    """BasicBlock forward. x_nchw: (N, C, H, W); conv weights HWIO (3,3,C,C)."""
    x = x_nchw.astype(jnp.float32)
    N, C, H, W = x.shape
    HN, WC = H * N, W * C

    # Lane-dense activation layout: row = h*N + n, col = w*C + c.
    x2d = jnp.transpose(x, (2, 0, 3, 1)).reshape(HN, WC)

    w1w = _wide_banded_conv_weights(w1.astype(jnp.float32), W)   # (WC, 3*WC)
    w2w = _wide_banded_conv_weights(w2.astype(jnp.float32), W)
    g1r = g1.reshape(1, C).astype(jnp.float32)
    b1r = b1.reshape(1, C).astype(jnp.float32)
    g2r = g2.reshape(1, C).astype(jnp.float32)
    b2r = b2.reshape(1, C).astype(jnp.float32)

    # Channel-group reduce / broadcast indicators for BN statistics:
    #   g_mat[j*C+c, c'] = 1 iff c == c'   (sum all lanes of one channel)
    #   b_mat = g_mat.T                    (broadcast per-channel back to lanes)
    g_mat = jnp.tile(jnp.eye(C, dtype=jnp.float32), (W, 1))   # (WC, C)
    b_mat = g_mat.T                                           # (C, WC)

    inv_cnt = 1.0 / float(N * H * W)

    def kernel(x_ref, w1_ref, w2_ref, g1_ref, b1_ref, g2_ref, b2_ref,
               gm_ref, bm_ref, out_ref):
        f32 = jnp.float32
        x2 = x_ref[...]                    # (HN, WC)
        gm = gm_ref[...]                   # (WC, C)
        bm = bm_ref[...]                   # (C, WC)

        # Row-validity masks for the vertical taps (zero padding along H):
        # tap kh=0 reads row h-1 (invalid for the first N rows), tap kh=2
        # reads row h+1 (invalid for the last N rows).
        row = jax.lax.broadcasted_iota(jnp.int32, (HN, WC), 0)
        dn_ok = row >= N
        up_ok = row < HN - N
        two_l = jax.lax.broadcasted_iota(jnp.int32, (2, WC), 0) == 0
        two_c = jax.lax.broadcasted_iota(jnp.int32, (2, C), 0) == 0

        def conv_bn(v, ww_ref, gamma_ref, beta_ref):
            # One wide MXU matmul yields all three vertical-tap products; the
            # vertical shifts are done on the *products* via sublane rolls
            # (XLU) + boundary masks (VPU) instead of extra matmuls.
            prod = jnp.dot(v, ww_ref[...], preferred_element_type=f32)  # (HN, 3WC)
            p0 = prod[:, 0:WC]            # tap kh=0 (needs input row h-1)
            p1 = prod[:, WC:2 * WC]       # tap kh=1
            p2 = prod[:, 2 * WC:3 * WC]   # tap kh=2 (needs input row h+1)
            acc = p1 + jnp.where(dn_ok, pltpu.roll(p0, shift=N, axis=0), 0.0)
            acc = acc + jnp.where(up_ok, pltpu.roll(p2, shift=HN - N, axis=0), 0.0)

            # BatchNorm, training mode (batch mean / biased variance), with
            # the per-channel reduce and broadcast each batched into one
            # small MXU matmul; statistics and the final FMA stay in f32.
            s1 = jnp.sum(acc, axis=0, keepdims=True)              # (1, WC)
            s2 = jnp.sum(acc * acc, axis=0, keepdims=True)        # (1, WC)
            stats_l = jnp.where(two_l, s1, s2)                    # (2, WC)
            stats_c = jnp.dot(stats_l, gm,
                              preferred_element_type=f32) * inv_cnt   # (2, C)
            mean_c = stats_c[0:1, :]
            var_c = stats_c[1:2, :] - mean_c * mean_c
            scale_c = gamma_ref[...] * jax.lax.rsqrt(var_c + BN_EPS)   # (1, C)
            shift_c = beta_ref[...] - mean_c * scale_c                 # (1, C)
            ss_c = jnp.where(two_c, scale_c, shift_c)                  # (2, C)
            ss_l = jnp.dot(ss_c, bm, preferred_element_type=f32)       # (2, WC)
            return acc * ss_l[0:1, :] + ss_l[1:2, :]

        h1 = jnp.maximum(conv_bn(x2, w1_ref, g1_ref, b1_ref), 0.0)   # stage 1
        y2 = conv_bn(h1, w2_ref, g2_ref, b2_ref) + x2                # + residual
        out_ref[...] = jnp.maximum(y2, 0.0)                          # lane-dense store

    cost = pl.CostEstimate(
        flops=2 * (2 * HN * WC * 3 * WC          # wide conv matmul
                   + 2 * 2 * WC * C + 2 * 2 * C * WC   # BN matmuls
                   + 8 * HN * WC),               # rolls/masks/FMA/ReLU (approx)
        transcendentals=2 * C,
        bytes_accessed=4 * (2 * HN * WC + 2 * WC * 3 * WC
                            + WC * C + C * WC + 4 * C),
    )

    out2d = pl.pallas_call(
        kernel,
        out_shape=jax.ShapeDtypeStruct((HN, WC), jnp.float32),
        in_specs=[pl.BlockSpec(memory_space=pltpu.MemorySpace.VMEM)] * 9,
        out_specs=pl.BlockSpec(memory_space=pltpu.MemorySpace.VMEM),
        cost_estimate=cost,
    )(x2d, w1w, w2w, g1r, b1r, g2r, b2r, g_mat, b_mat)

    return jnp.transpose(out2d.reshape(H, N, W, C), (1, 3, 0, 2))


def _reference_forward(x_nchw, w1, w2, g1, b1, g2, b2):
    """Pure-JAX reference (lax conv) for correctness checking."""
    x = jnp.transpose(x_nchw, (0, 2, 3, 1)).astype(jnp.float32)

    def conv(h, w):
        return jax.lax.conv_general_dilated(
            h, w, window_strides=(1, 1), padding=((1, 1), (1, 1)),
            dimension_numbers=('NHWC', 'HWIO', 'NHWC'))

    def bn(h, g, b):
        m = jnp.mean(h, axis=(0, 1, 2), keepdims=True)
        v = jnp.mean((h - m) ** 2, axis=(0, 1, 2), keepdims=True)
        return (h - m) * jax.lax.rsqrt(v + BN_EPS) * g + b

    h = jnp.maximum(bn(conv(x, w1), g1, b1), 0.0)
    h = bn(conv(h, w2), g2, b2) + x
    h = jnp.maximum(h, 0.0)
    return jnp.transpose(h, (0, 3, 1, 2))


if __name__ == "__main__":
    # inplanes = planes = 8 (residual path requires matching channels since
    # downsample=None); batch=2, spatial=16.
    N, C, H, W = 2, 8, 16, 16

    key = jax.random.PRNGKey(0)
    kx, kw1, kw2, kg1, kb1, kg2, kb2 = jax.random.split(key, 7)

    x = jax.random.normal(kx, (N, C, H, W), jnp.float32)

    # Conv weights in HWIO layout (3, 3, Ci, Co), no bias (matches conv3x3).
    w1 = 0.1 * jax.random.normal(kw1, (3, 3, C, C), jnp.float32)
    w2 = 0.1 * jax.random.normal(kw2, (3, 3, C, C), jnp.float32)

    # BatchNorm affine params.
    g1 = 1.0 + 0.1 * jax.random.normal(kg1, (C,), jnp.float32)
    b1 = 0.1 * jax.random.normal(kb1, (C,), jnp.float32)
    g2 = 1.0 + 0.1 * jax.random.normal(kg2, (C,), jnp.float32)
    b2 = 0.1 * jax.random.normal(kb2, (C,), jnp.float32)

    out = jax.block_until_ready(basic_block_forward(x, w1, w2, g1, b1, g2, b2))
    ref = jax.block_until_ready(_reference_forward(x, w1, w2, g1, b1, g2, b2))

    assert out.shape == (N, C, H, W)
    max_diff = jnp.max(jnp.abs(out - ref))
    assert jnp.allclose(out, ref, rtol=1e-3, atol=2e-3), (
        f"max abs diff {max_diff}")

    print("KERNEL_OK")
</pallas_src>

<mosaic_0001>
module attributes {stable_mosaic.version = 11 : i64} {
  func.func @kernel(%arg0: memref<32x128xf32, #tpu.memory_space<vmem>>, %arg1: memref<128x384xf32, #tpu.memory_space<vmem>>, %arg2: memref<128x384xf32, #tpu.memory_space<vmem>>, %arg3: memref<1x8xf32, #tpu.memory_space<vmem>>, %arg4: memref<1x8xf32, #tpu.memory_space<vmem>>, %arg5: memref<1x8xf32, #tpu.memory_space<vmem>>, %arg6: memref<1x8xf32, #tpu.memory_space<vmem>>, %arg7: memref<128x8xf32, #tpu.memory_space<vmem>>, %arg8: memref<8x128xf32, #tpu.memory_space<vmem>>, %arg9: memref<32x128xf32, #tpu.memory_space<vmem>>) attributes {dimension_semantics = [], scalar_prefetch = 0 : i64, scratch_operands = 0 : i64, tpu.core_type = #tpu.core_type<tc>} {
    %c0 = arith.constant 0 : index
    %c0_0 = arith.constant 0 : index
    %0 = vector.load %arg0[%c0, %c0_0] : memref<32x128xf32, #tpu.memory_space<vmem>>, vector<32x128xf32>
    %c0_1 = arith.constant 0 : index
    %c0_2 = arith.constant 0 : index
    %1 = vector.load %arg7[%c0_1, %c0_2] : memref<128x8xf32, #tpu.memory_space<vmem>>, vector<128x8xf32>
    %c0_3 = arith.constant 0 : index
    %c0_4 = arith.constant 0 : index
    %2 = vector.load %arg8[%c0_3, %c0_4] : memref<8x128xf32, #tpu.memory_space<vmem>>, vector<8x128xf32>
    %3 = tpu.iota {dimensions = array<i32: 0>} : vector<32x128xi32>
    %c2_i32 = arith.constant 2 : i32
    %4 = vector.broadcast %c2_i32 : i32 to vector<32x128xi32>
    %5 = arith.cmpi sge, %3, %4 : vector<32x128xi32>
    %c30_i32 = arith.constant 30 : i32
    %6 = vector.broadcast %c30_i32 : i32 to vector<32x128xi32>
    %7 = arith.cmpi slt, %3, %6 : vector<32x128xi32>
    %8 = tpu.iota {dimensions = array<i32: 0>} : vector<2x128xi32>
    %c0_i32 = arith.constant 0 : i32
    %9 = vector.broadcast %c0_i32 : i32 to vector<2x128xi32>
    %10 = arith.cmpi eq, %8, %9 : vector<2x128xi32>
    %11 = tpu.iota {dimensions = array<i32: 0>} : vector<2x8xi32>
    %c0_i32_5 = arith.constant 0 : i32
    %12 = vector.broadcast %c0_i32_5 : i32 to vector<2x8xi32>
    %13 = arith.cmpi eq, %11, %12 : vector<2x8xi32>
    %c0_6 = arith.constant 0 : index
    %c0_7 = arith.constant 0 : index
    %14 = vector.load %arg1[%c0_6, %c0_7] : memref<128x384xf32, #tpu.memory_space<vmem>>, vector<128x384xf32>
    %cst = arith.constant dense<0.000000e+00> : vector<32x384xf32>
    %15 = tpu.matmul %0, %14, %cst {dimension_numbers = #tpu.dot_dimension_numbers<[1], [0], [0], [1], [0, 0, 1, 1], [], []>} : vector<32x128xf32>, vector<128x384xf32>, vector<32x384xf32> -> vector<32x384xf32>
    %16 = vector.extract_strided_slice %15 {offsets = [0, 0], sizes = [32, 128], strides = [1, 1]} : vector<32x384xf32> to vector<32x128xf32>
    %17 = vector.extract_strided_slice %15 {offsets = [0, 128], sizes = [32, 128], strides = [1, 1]} : vector<32x384xf32> to vector<32x128xf32>
    %18 = vector.extract_strided_slice %15 {offsets = [0, 256], sizes = [32, 128], strides = [1, 1]} : vector<32x384xf32> to vector<32x128xf32>
    %c2_i32_8 = arith.constant 2 : i32
    %19 = tpu.dynamic_rotate %16 by %c2_i32_8 dim 0 : vector<32x128xf32>, i32 -> vector<32x128xf32>
    %cst_9 = arith.constant 0.000000e+00 : f32
    %20 = vector.broadcast %cst_9 : f32 to vector<32x128xf32>
    %21 = arith.select %5, %19, %20 : vector<32x128xi1>, vector<32x128xf32>
    %22 = arith.addf %17, %21 : vector<32x128xf32>
    %c30_i32_10 = arith.constant 30 : i32
    %23 = tpu.dynamic_rotate %18 by %c30_i32_10 dim 0 : vector<32x128xf32>, i32 -> vector<32x128xf32>
    %cst_11 = arith.constant 0.000000e+00 : f32
    %24 = vector.broadcast %cst_11 : f32 to vector<32x128xf32>
    %25 = arith.select %7, %23, %24 : vector<32x128xi1>, vector<32x128xf32>
    %26 = arith.addf %22, %25 : vector<32x128xf32>
    %cst_12 = arith.constant dense<0.000000e+00> : vector<128xf32>
    %27 = vector.multi_reduction <add>, %26, %cst_12 [0] : vector<32x128xf32> to vector<128xf32>
    %28 = vector.shape_cast %27 : vector<128xf32> to vector<1x128xf32>
    %29 = arith.mulf %26, %26 : vector<32x128xf32>
    %cst_13 = arith.constant dense<0.000000e+00> : vector<128xf32>
    %30 = vector.multi_reduction <add>, %29, %cst_13 [0] : vector<32x128xf32> to vector<128xf32>
    %31 = vector.shape_cast %30 : vector<128xf32> to vector<1x128xf32>
    %32 = vector.shape_cast %28 : vector<1x128xf32> to vector<1x128xf32>
    %33 = vector.broadcast %32 : vector<1x128xf32> to vector<2x128xf32>
    %34 = vector.shape_cast %31 : vector<1x128xf32> to vector<1x128xf32>
    %35 = vector.broadcast %34 : vector<1x128xf32> to vector<2x128xf32>
    %36 = arith.select %10, %33, %35 : vector<2x128xi1>, vector<2x128xf32>
    %cst_14 = arith.constant dense<0.000000e+00> : vector<2x8xf32>
    %37 = tpu.matmul %36, %1, %cst_14 {dimension_numbers = #tpu.dot_dimension_numbers<[1], [0], [0], [1], [0, 0, 1, 1], [], []>} : vector<2x128xf32>, vector<128x8xf32>, vector<2x8xf32> -> vector<2x8xf32>
    %cst_15 = arith.constant 0.001953125 : f32
    %38 = vector.broadcast %cst_15 : f32 to vector<2x8xf32>
    %39 = arith.mulf %37, %38 : vector<2x8xf32>
    %40 = vector.extract_strided_slice %39 {offsets = [0, 0], sizes = [1, 8], strides = [1, 1]} : vector<2x8xf32> to vector<1x8xf32>
    %41 = vector.extract_strided_slice %39 {offsets = [1, 0], sizes = [1, 8], strides = [1, 1]} : vector<2x8xf32> to vector<1x8xf32>
    %42 = arith.mulf %40, %40 : vector<1x8xf32>
    %43 = arith.subf %41, %42 : vector<1x8xf32>
    %c0_16 = arith.constant 0 : index
    %c0_17 = arith.constant 0 : index
    %44 = vector.load %arg3[%c0_16, %c0_17] : memref<1x8xf32, #tpu.memory_space<vmem>>, vector<1x8xf32>
    %cst_18 = arith.constant 9.99999974E-6 : f32
    %45 = vector.broadcast %cst_18 : f32 to vector<1x8xf32>
    %46 = arith.addf %43, %45 : vector<1x8xf32>
    %47 = math.rsqrt %46 : vector<1x8xf32>
    %48 = arith.mulf %44, %47 : vector<1x8xf32>
    %c0_19 = arith.constant 0 : index
    %c0_20 = arith.constant 0 : index
    %49 = vector.load %arg4[%c0_19, %c0_20] : memref<1x8xf32, #tpu.memory_space<vmem>>, vector<1x8xf32>
    %50 = arith.mulf %40, %48 : vector<1x8xf32>
    %51 = arith.subf %49, %50 : vector<1x8xf32>
    %52 = vector.shape_cast %48 : vector<1x8xf32> to vector<1x8xf32>
    %53 = vector.broadcast %52 : vector<1x8xf32> to vector<2x8xf32>
    %54 = vector.shape_cast %51 : vector<1x8xf32> to vector<1x8xf32>
    %55 = vector.broadcast %54 : vector<1x8xf32> to vector<2x8xf32>
    %56 = arith.select %13, %53, %55 : vector<2x8xi1>, vector<2x8xf32>
    %cst_21 = arith.constant dense<0.000000e+00> : vector<2x128xf32>
    %57 = tpu.matmul %56, %2, %cst_21 {dimension_numbers = #tpu.dot_dimension_numbers<[1], [0], [0], [1], [0, 0, 1, 1], [], []>} : vector<2x8xf32>, vector<8x128xf32>, vector<2x128xf32> -> vector<2x128xf32>
    %58 = vector.extract_strided_slice %57 {offsets = [0, 0], sizes = [1, 128], strides = [1, 1]} : vector<2x128xf32> to vector<1x128xf32>
    %59 = vector.broadcast %58 : vector<1x128xf32> to vector<32x128xf32>
    %60 = arith.mulf %26, %59 : vector<32x128xf32>
    %61 = vector.extract_strided_slice %57 {offsets = [1, 0], sizes = [1, 128], strides = [1, 1]} : vector<2x128xf32> to vector<1x128xf32>
    %62 = vector.broadcast %61 : vector<1x128xf32> to vector<32x128xf32>
    %63 = arith.addf %60, %62 : vector<32x128xf32>
    %cst_22 = arith.constant 0.000000e+00 : f32
    %64 = vector.broadcast %cst_22 : f32 to vector<32x128xf32>
    %65 = arith.maximumf %63, %64 : vector<32x128xf32>
    %c0_23 = arith.constant 0 : index
    %c0_24 = arith.constant 0 : index
    %66 = vector.load %arg2[%c0_23, %c0_24] : memref<128x384xf32, #tpu.memory_space<vmem>>, vector<128x384xf32>
    %cst_25 = arith.constant dense<0.000000e+00> : vector<32x384xf32>
    %67 = tpu.matmul %65, %66, %cst_25 {dimension_numbers = #tpu.dot_dimension_numbers<[1], [0], [0], [1], [0, 0, 1, 1], [], []>} : vector<32x128xf32>, vector<128x384xf32>, vector<32x384xf32> -> vector<32x384xf32>
    %68 = vector.extract_strided_slice %67 {offsets = [0, 0], sizes = [32, 128], strides = [1, 1]} : vector<32x384xf32> to vector<32x128xf32>
    %69 = vector.extract_strided_slice %67 {offsets = [0, 128], sizes = [32, 128], strides = [1, 1]} : vector<32x384xf32> to vector<32x128xf32>
    %70 = vector.extract_strided_slice %67 {offsets = [0, 256], sizes = [32, 128], strides = [1, 1]} : vector<32x384xf32> to vector<32x128xf32>
    %c2_i32_26 = arith.constant 2 : i32
    %71 = tpu.dynamic_rotate %68 by %c2_i32_26 dim 0 : vector<32x128xf32>, i32 -> vector<32x128xf32>
    %cst_27 = arith.constant 0.000000e+00 : f32
    %72 = vector.broadcast %cst_27 : f32 to vector<32x128xf32>
    %73 = arith.select %5, %71, %72 : vector<32x128xi1>, vector<32x128xf32>
    %74 = arith.addf %69, %73 : vector<32x128xf32>
    %c30_i32_28 = arith.constant 30 : i32
    %75 = tpu.dynamic_rotate %70 by %c30_i32_28 dim 0 : vector<32x128xf32>, i32 -> vector<32x128xf32>
    %cst_29 = arith.constant 0.000000e+00 : f32
    %76 = vector.broadcast %cst_29 : f32 to vector<32x128xf32>
    %77 = arith.select %7, %75, %76 : vector<32x128xi1>, vector<32x128xf32>
    %78 = arith.addf %74, %77 : vector<32x128xf32>
    %cst_30 = arith.constant dense<0.000000e+00> : vector<128xf32>
    %79 = vector.multi_reduction <add>, %78, %cst_30 [0] : vector<32x128xf32> to vector<128xf32>
    %80 = vector.shape_cast %79 : vector<128xf32> to vector<1x128xf32>
    %81 = arith.mulf %78, %78 : vector<32x128xf32>
    %cst_31 = arith.constant dense<0.000000e+00> : vector<128xf32>
    %82 = vector.multi_reduction <add>, %81, %cst_31 [0] : vector<32x128xf32> to vector<128xf32>
    %83 = vector.shape_cast %82 : vector<128xf32> to vector<1x128xf32>
    %84 = vector.shape_cast %80 : vector<1x128xf32> to vector<1x128xf32>
    %85 = vector.broadcast %84 : vector<1x128xf32> to vector<2x128xf32>
    %86 = vector.shape_cast %83 : vector<1x128xf32> to vector<1x128xf32>
    %87 = vector.broadcast %86 : vector<1x128xf32> to vector<2x128xf32>
    %88 = arith.select %10, %85, %87 : vector<2x128xi1>, vector<2x128xf32>
    %cst_32 = arith.constant dense<0.000000e+00> : vector<2x8xf32>
    %89 = tpu.matmul %88, %1, %cst_32 {dimension_numbers = #tpu.dot_dimension_numbers<[1], [0], [0], [1], [0, 0, 1, 1], [], []>} : vector<2x128xf32>, vector<128x8xf32>, vector<2x8xf32> -> vector<2x8xf32>
    %cst_33 = arith.constant 0.001953125 : f32
    %90 = vector.broadcast %cst_33 : f32 to vector<2x8xf32>
    %91 = arith.mulf %89, %90 : vector<2x8xf32>
    %92 = vector.extract_strided_slice %91 {offsets = [0, 0], sizes = [1, 8], strides = [1, 1]} : vector<2x8xf32> to vector<1x8xf32>
    %93 = vector.extract_strided_slice %91 {offsets = [1, 0], sizes = [1, 8], strides = [1, 1]} : vector<2x8xf32> to vector<1x8xf32>
    %94 = arith.mulf %92, %92 : vector<1x8xf32>
    %95 = arith.subf %93, %94 : vector<1x8xf32>
    %c0_34 = arith.constant 0 : index
    %c0_35 = arith.constant 0 : index
    %96 = vector.load %arg5[%c0_34, %c0_35] : memref<1x8xf32, #tpu.memory_space<vmem>>, vector<1x8xf32>
    %cst_36 = arith.constant 9.99999974E-6 : f32
    %97 = vector.broadcast %cst_36 : f32 to vector<1x8xf32>
    %98 = arith.addf %95, %97 : vector<1x8xf32>
    %99 = math.rsqrt %98 : vector<1x8xf32>
    %100 = arith.mulf %96, %99 : vector<1x8xf32>
    %c0_37 = arith.constant 0 : index
    %c0_38 = arith.constant 0 : index
    %101 = vector.load %arg6[%c0_37, %c0_38] : memref<1x8xf32, #tpu.memory_space<vmem>>, vector<1x8xf32>
    %102 = arith.mulf %92, %100 : vector<1x8xf32>
    %103 = arith.subf %101, %102 : vector<1x8xf32>
    %104 = vector.shape_cast %100 : vector<1x8xf32> to vector<1x8xf32>
    %105 = vector.broadcast %104 : vector<1x8xf32> to vector<2x8xf32>
    %106 = vector.shape_cast %103 : vector<1x8xf32> to vector<1x8xf32>
    %107 = vector.broadcast %106 : vector<1x8xf32> to vector<2x8xf32>
    %108 = arith.select %13, %105, %107 : vector<2x8xi1>, vector<2x8xf32>
    %cst_39 = arith.constant dense<0.000000e+00> : vector<2x128xf32>
    %109 = tpu.matmul %108, %2, %cst_39 {dimension_numbers = #tpu.dot_dimension_numbers<[1], [0], [0], [1], [0, 0, 1, 1], [], []>} : vector<2x8xf32>, vector<8x128xf32>, vector<2x128xf32> -> vector<2x128xf32>
    %110 = vector.extract_strided_slice %109 {offsets = [0, 0], sizes = [1, 128], strides = [1, 1]} : vector<2x128xf32> to vector<1x128xf32>
    %111 = vector.broadcast %110 : vector<1x128xf32> to vector<32x128xf32>
    %112 = arith.mulf %78, %111 : vector<32x128xf32>
    %113 = vector.extract_strided_slice %109 {offsets = [1, 0], sizes = [1, 128], strides = [1, 1]} : vector<2x128xf32> to vector<1x128xf32>
    %114 = vector.broadcast %113 : vector<1x128xf32> to vector<32x128xf32>
    %115 = arith.addf %112, %114 : vector<32x128xf32>
    %116 = arith.addf %115, %0 : vector<32x128xf32>
    %cst_40 = arith.constant 0.000000e+00 : f32
    %117 = vector.broadcast %cst_40 : f32 to vector<32x128xf32>
    %118 = arith.maximumf %116, %117 : vector<32x128xf32>
    %c0_41 = arith.constant 0 : index
    %c0_42 = arith.constant 0 : index
    %119 = vector.load %arg9[%c0_41, %c0_42] : memref<32x128xf32, #tpu.memory_space<vmem>>, vector<32x128xf32>
    tpu.vector_store %arg9[%c0_41, %c0_42], %118 {strides = array<i32>} : memref<32x128xf32, #tpu.memory_space<vmem>>, vector<32x128xf32>,
    return
  }
}

</mosaic_0001>

<llo_original>
// kernel: tpu_custom_call.1
$region0: #{tpu_custom_call.1}
  #allocation0 [shape = 'u32[]', space=smem, size = 0x4, offset = 0x4, fixed_abs, tag = 'smem constant byte address 0x4 - core index']
  #allocation1 [shape = 'u32[144,128]{1,0:T(1,128)}', space=vmem, size = 0x12000, scoped, tag = 'internal scratch']
  %s0 = inlined_call_operand.vmem [shape: f32[32,128], index: 0, kind: input, shape index: {}]
  %s1 = inlined_call_operand.hbm [shape: f32[128,384], index: 1, kind: input, shape index: {}]
  %s2 = inlined_call_operand.hbm [shape: f32[128,384], index: 2, kind: input, shape index: {}]
  %s3 = inlined_call_operand.vmem [shape: f32[1,8], index: 3, kind: input, shape index: {}]
  %s4 = inlined_call_operand.vmem [shape: f32[1,8], index: 4, kind: input, shape index: {}]
  %s5 = inlined_call_operand.vmem [shape: f32[1,8], index: 5, kind: input, shape index: {}]
  %s6 = inlined_call_operand.vmem [shape: f32[1,8], index: 6, kind: input, shape index: {}]
  %s7 = inlined_call_operand.vmem [shape: f32[128,8], index: 7, kind: input, shape index: {}]
  %s8 = inlined_call_operand.vmem [shape: f32[8,128], index: 8, kind: input, shape index: {}]
  %s9 = inlined_call_operand.hbm [shape: f32[32,128], index: 9, kind: output, shape index: {}]
  %s10 = sld [smem:[#allocation0]]
  $region54: #{tpu_custom_call.1} parent=0
    _
  %s12 = ssub.s32 1, %s10
  %s13 = scalar_select 0, %s12, %s10
  $region1: #{tpu_custom_call.1} parent=0
    #allocation2 [shape = 'u8[196608]{0}', space=vmem, size = 0x30000, scoped, tag = 'input window, operand 1, single buffered']
    #allocation3 [shape = 's32[1]{0}', space=sflag, size = 0x4, scoped, tag = 'scoped memory for tpu_custom_call.1']
    #allocation4 [shape = 's32[1]{0}', space=sflag, size = 0x4, scoped, tag = 'scoped memory for tpu_custom_call.1']
    #allocation5 [shape = 'u8[196608]{0}', space=vmem, size = 0x30000, scoped, tag = 'input window, operand 2, single buffered']
    #allocation6 [shape = 's32[1]{0}', space=sflag, size = 0x4, scoped, tag = 'scoped memory for tpu_custom_call.1']
    #allocation7 [shape = 'u8[16384]{0}', space=vmem, size = 0x4000, scoped, tag = 'output window, operand 0, single buffered']
    %14 = vsyncpa [#allocation3], 0
    %15 = vsyncpa [#allocation6], 0
    %16 = vsyncpa [#allocation4], 0
    // Predicated region
    $region2: #{tpu_custom_call.1} parent=1 // pred_check
      _
    $region3: #{tpu_custom_call.1} parent=1 // pred_check_branch
      %18 = sbr.rel (0) target = $region5
    $region4: #{tpu_custom_call.1} parent=1 // pred_region
      _
    $region5: #{tpu_custom_call.1} parent=1 // pred_fallthru
      _
    // Predicated region
    $region6: #{tpu_custom_call.1} parent=1 // pred_check
      _
    $region7: #{tpu_custom_call.1} parent=1 // pred_check_branch
      %20 = sbr.rel (0) target = $region9
    $region8: #{tpu_custom_call.1} parent=1 // pred_region
      %s22 = ssub.s32 6144, 6144
      %23 = vsyncadd [#allocation3], %s22
      %s24 = sshll.u32 [#allocation2], 4
      %s25 = int_to_ptr.vmem [resolvable:$true] %s24
      %30 = dma.hbm_to_vmem [thread:$0]  %s1, 6144, %s25, [#allocation3], 384, 384, 24
    $region9: #{tpu_custom_call.1} parent=1 // pred_fallthru
      _
    // Predicated region
    $region10: #{tpu_custom_call.1} parent=1 // pred_check
      _
    $region11: #{tpu_custom_call.1} parent=1 // pred_check_branch
      %32 = sbr.rel (0) target = $region13
    $region12: #{tpu_custom_call.1} parent=1 // pred_region
      %s34 = ssub.s32 6144, 6144
      %35 = vsyncadd [#allocation6], %s34
      %s36 = sshll.u32 [#allocation5], 4
      %s37 = int_to_ptr.vmem [resolvable:$true] %s36
      %42 = dma.hbm_to_vmem [thread:$0]  %s2, 6144, %s37, [#allocation6], 384, 384, 24
    $region13: #{tpu_custom_call.1} parent=1 // pred_fallthru
      _
    // Predicated region
    $region14: #{tpu_custom_call.1} parent=1 // pred_check
      _
    $region15: #{tpu_custom_call.1} parent=1 // pred_check_branch
      %44 = sbr.rel (0) target = $region17
    $region16: #{tpu_custom_call.1} parent=1 // pred_region
      _
    $region17: #{tpu_custom_call.1} parent=1 // pred_fallthru
      _
    // Predicated region
    $region18: #{tpu_custom_call.1} parent=1 // pred_check
      _
    $region19: #{tpu_custom_call.1} parent=1 // pred_check_branch
      %46 = sbr.rel (0) target = $region21
    $region20: #{tpu_custom_call.1} parent=1 // pred_region
      _
    $region21: #{tpu_custom_call.1} parent=1 // pred_fallthru
      _
    // Predicated region
    $region22: #{tpu_custom_call.1} parent=1 // pred_check
      _
    $region23: #{tpu_custom_call.1} parent=1 // pred_check_branch
      %48 = sbr.rel (0) target = $region25
    $region24: #{tpu_custom_call.1} parent=1 // pred_region
      _
    $region25: #{tpu_custom_call.1} parent=1 // pred_fallthru
      _
    // Predicated region
    $region26: #{tpu_custom_call.1} parent=1 // pred_check
      _
    $region27: #{tpu_custom_call.1} parent=1 // pred_check_branch
      %50 = sbr.rel (0) target = $region29
    $region28: #{tpu_custom_call.1} parent=1 // pred_region
      _
    $region29: #{tpu_custom_call.1} parent=1 // pred_fallthru
      _
    // Predicated region
    $region30: #{tpu_custom_call.1} parent=1 // pred_check
      _
    $region31: #{tpu_custom_call.1} parent=1 // pred_check_branch
      %52 = sbr.rel (0) target = $region33
    $region32: #{tpu_custom_call.1} parent=1 // pred_region
      _
    $region33: #{tpu_custom_call.1} parent=1 // pred_fallthru
      _
    // Predicated region
    $region34: #{tpu_custom_call.1} parent=1 // pred_check
      _
    $region35: #{tpu_custom_call.1} parent=1 // pred_check_branch
      %54 = sbr.rel (0) target = $region37
    $region36: #{tpu_custom_call.1} parent=1 // pred_region
      _
    $region37: #{tpu_custom_call.1} parent=1 // pred_fallthru
      _
    // Predicated region
    $region38: #{tpu_custom_call.1} parent=1 // pred_check
      _
    $region39: #{tpu_custom_call.1} parent=1 // pred_check_branch
      %56 = sbr.rel (0) target = $region41
    $region40: #{tpu_custom_call.1} parent=1 // pred_region
      %57 = dma.done [#allocation3], 6144
    $region41: #{tpu_custom_call.1} parent=1 // pred_fallthru
      _
    // Predicated region
    $region42: #{tpu_custom_call.1} parent=1 // pred_check
      _
    $region43: #{tpu_custom_call.1} parent=1 // pred_check_branch
      %59 = sbr.rel (0) target = $region45
    $region44: #{tpu_custom_call.1} parent=1 // pred_region
      %60 = dma.done [#allocation6], 6144
    $region45: #{tpu_custom_call.1} parent=1 // pred_fallthru
      _
    %v61 = vld [vmem:[%s0] sm:$0xff]
    %v62 = vld [vmem:[%s0 + $0x8] sm:$0xff]
    %v63 = vld [vmem:[%s0 + $0x10] sm:$0xff]
    %v64 = vld [vmem:[%s0 + $0x18] sm:$0xff]
    %v65 = vld [vmem:[%s7] sm:$0xff]
    %v66 = vld [vmem:[%s7 + $0x8] sm:$0xff]
    %v67 = vld [vmem:[%s7 + $0x10] sm:$0xff]
    %v68 = vld [vmem:[%s7 + $0x18] sm:$0xff]
    %v69 = vld [vmem:[%s7 + $0x20] sm:$0xff]
    %v70 = vld [vmem:[%s7 + $0x28] sm:$0xff]
    %v71 = vld [vmem:[%s7 + $0x30] sm:$0xff]
    %v72 = vld [vmem:[%s7 + $0x38] sm:$0xff]
    %v73 = vld [vmem:[%s7 + $0x40] sm:$0xff]
    %v74 = vld [vmem:[%s7 + $0x48] sm:$0xff]
    %v75 = vld [vmem:[%s7 + $0x50] sm:$0xff]
    %v76 = vld [vmem:[%s7 + $0x58] sm:$0xff]
    %v77 = vld [vmem:[%s7 + $0x60] sm:$0xff]
    %v78 = vld [vmem:[%s7 + $0x68] sm:$0xff]
    %v79 = vld [vmem:[%s7 + $0x70] sm:$0xff]
    %v80 = vld [vmem:[%s7 + $0x78] sm:$0xff]
    %v81 = vld [vmem:[%s8] sm:$0xff]
    %v82 = vlaneseq
    %v83 = vshrl.u32 %v82, 7
    %v84 = vadd.s32 %v83, 8
    %v85 = vadd.s32 %v83, 16
    %v86 = vadd.s32 %v83, 24
    %vm87 = vcmp.ge.s32.totalorder %v83, 2
    %vm88 = vcmp.ge.s32.totalorder %v84, 2
    %vm89 = vcmp.ge.s32.totalorder %v85, 2
    %vm90 = vcmp.ge.s32.totalorder %v86, 2
    %vm91 = vcmp.lt.s32.totalorder %v83, 30
    %vm92 = vcmp.lt.s32.totalorder %v84, 30
    %vm93 = vcmp.lt.s32.totalorder %v85, 30
    %vm94 = vcmp.lt.s32.totalorder %v86, 30
    %vm95 = vcmp.eq.s32.totalorder %v83, 0
    %v96 = vld [vmem:[#allocation2] sm:$0xff]
    %v97 = vld [vmem:[#allocation2 + $0x8] sm:$0xff]
    %v98 = vld [vmem:[#allocation2 + $0x10] sm:$0xff]
    %v99 = vld [vmem:[#allocation2 + $0x18] sm:$0xff]
    %v100 = vld [vmem:[#allocation2 + $0x20] sm:$0xff]
    %v101 = vld [vmem:[#allocation2 + $0x28] sm:$0xff]
    %v102 = vld [vmem:[#allocation2 + $0x30] sm:$0xff]
    %v103 = vld [vmem:[#allocation2 + $0x38] sm:$0xff]
    %v104 = vld [vmem:[#allocation2 + $0x40] sm:$0xff]
    %v105 = vld [vmem:[#allocation2 + $0x48] sm:$0xff]
    %v106 = vld [vmem:[#allocation2 + $0x50] sm:$0xff]
    %v107 = vld [vmem:[#allocation2 + $0x58] sm:$0xff]
    %v108 = vld [vmem:[#allocation2 + $0x60] sm:$0xff]
    %v109 = vld [vmem:[#allocation2 + $0x68] sm:$0xff]
    %v110 = vld [vmem:[#allocation2 + $0x70] sm:$0xff]
    %v111 = vld [vmem:[#allocation2 + $0x78] sm:$0xff]
    %v112 = vld [vmem:[#allocation2 + $0x80] sm:$0xff]
    %v113 = vld [vmem:[#allocation2 + $0x88] sm:$0xff]
    %v114 = vld [vmem:[#allocation2 + $0x90] sm:$0xff]
    %v115 = vld [vmem:[#allocation2 + $0x98] sm:$0xff]
    %v116 = vld [vmem:[#allocation2 + $0xa0] sm:$0xff]
    %v117 = vld [vmem:[#allocation2 + $0xa8] sm:$0xff]
    %v118 = vld [vmem:[#allocation2 + $0xb0] sm:$0xff]
    %v119 = vld [vmem:[#allocation2 + $0xb8] sm:$0xff]
    %v120 = vld [vmem:[#allocation2 + $0xc0] sm:$0xff]
    %v121 = vld [vmem:[#allocation2 + $0xc8] sm:$0xff]
    %v122 = vld [vmem:[#allocation2 + $0xd0] sm:$0xff]
    %v123 = vld [vmem:[#allocation2 + $0xd8] sm:$0xff]
    %v124 = vld [vmem:[#allocation2 + $0xe0] sm:$0xff]
    %v125 = vld [vmem:[#allocation2 + $0xe8] sm:$0xff]
    %v126 = vld [vmem:[#allocation2 + $0xf0] sm:$0xff]
    %v127 = vld [vmem:[#allocation2 + $0xf8] sm:$0xff]
    %v128 = vld [vmem:[#allocation2 + $0x100] sm:$0xff]
    %v129 = vld [vmem:[#allocation2 + $0x108] sm:$0xff]
    %v130 = vld [vmem:[#allocation2 + $0x110] sm:$0xff]
    %v131 = vld [vmem:[#allocation2 + $0x118] sm:$0xff]
    %v132 = vld [vmem:[#allocation2 + $0x120] sm:$0xff]
    %v133 = vld [vmem:[#allocation2 + $0x128] sm:$0xff]
    %v134 = vld [vmem:[#allocation2 + $0x130] sm:$0xff]
    %v135 = vld [vmem:[#allocation2 + $0x138] sm:$0xff]
    %v136 = vld [vmem:[#allocation2 + $0x140] sm:$0xff]
    %v137 = vld [vmem:[#allocation2 + $0x148] sm:$0xff]
    %v138 = vld [vmem:[#allocation2 + $0x150] sm:$0xff]
    %v139 = vld [vmem:[#allocation2 + $0x158] sm:$0xff]
    %v140 = vld [vmem:[#allocation2 + $0x160] sm:$0xff]
    %v141 = vld [vmem:[#allocation2 + $0x168] sm:$0xff]
    %v142 = vld [vmem:[#allocation2 + $0x170] sm:$0xff]
    %v143 = vld [vmem:[#allocation2 + $0x178] sm:$0xff]
    %144 = vmatprep.subr.mxu0 %v97
    %145 = vmatpush1.msra.mxu0 %v96
    %146 = vmatprep.subr.mxu0 %v100
    %147 = vmatpush1.msra.mxu0 %v99
    %148 = vmatprep.subr.mxu0 %v103
    %149 = vmatpush1.msra.mxu0 %v102
    %150 = vmatprep.subr.mxu0 %v106
    %151 = vmatpush1.msra.mxu0 %v105
    %152 = vmatprep.subr.mxu0 %v109
    %153 = vmatpush1.msra.mxu0 %v108
    %154 = vmatprep.subr.mxu0 %v112
    %155 = vmatpush1.msra.mxu0 %v111
    %156 = vmatprep.subr.mxu0 %v115
    %157 = vmatpush1.msra.mxu0 %v114
    %158 = vmatprep.subr.mxu0 %v118
    %159 = vmatpush1.msra.mxu0 %v117
    %160 = vmatprep.subr.mxu0 %v121
    %161 = vmatpush1.msra.mxu0 %v120
    %162 = vmatprep.subr.mxu0 %v124
    %163 = vmatpush1.msra.mxu0 %v123
    %164 = vmatprep.subr.mxu0 %v127
    %165 = vmatpush1.msra.mxu0 %v126
    %166 = vmatprep.subr.mxu0 %v130
    %167 = vmatpush1.msra.mxu0 %v129
    %168 = vmatprep.subr.mxu0 %v133
    %169 = vmatpush1.msra.mxu0 %v132
    %170 = vmatprep.subr.mxu0 %v136
    %171 = vmatpush1.msra.mxu0 %v135
    %172 = vmatprep.subr.mxu0 %v139
    %173 = vmatpush1.msra.mxu0 %v138
    %174 = vmatprep.subr.mxu0 %v142
    %175 = vmatpush1.msra.mxu0 %v141
    %176 = vmatprep.subr.mxu0 0.0
    %177 = vmatpush1.msra.mxu0 0.0
    %178 = vmatprep.subr.mxu0 0.0
    %179 = vmatpush1.msra.mxu0 0.0
    %180 = vmatprep.subr.mxu0 0.0
    %181 = vmatpush1.msra.mxu0 0.0
    %182 = vmatprep.subr.mxu0 0.0
    %183 = vmatpush1.msra.mxu0 0.0
    %184 = vmatprep.subr.mxu0 0.0
    %185 = vmatpush1.msra.mxu0 0.0
    %186 = vmatprep.subr.mxu0 0.0
    %187 = vmatpush1.msra.mxu0 0.0
    %188 = vmatprep.subr.mxu0 0.0
    %189 = vmatpush1.msra.mxu0 0.0
    %190 = vmatprep.subr.mxu0 0.0
    %191 = vmatpush1.msra.mxu0 0.0
    %192 = vmatprep.subr.mxu0 0.0
    %193 = vmatpush1.msra.mxu0 0.0
    %194 = vmatprep.subr.mxu0 0.0
    %195 = vmatpush1.msra.mxu0 0.0
    %196 = vmatprep.subr.mxu0 0.0
    %197 = vmatpush1.msra.mxu0 0.0
    %198 = vmatprep.subr.mxu0 0.0
    %199 = vmatpush1.msra.mxu0 0.0
    %200 = vmatprep.subr.mxu0 0.0
    %201 = vmatpush1.msra.mxu0 0.0
    %202 = vmatprep.subr.mxu0 0.0
    %203 = vmatpush1.msra.mxu0 0.0
    %204 = vmatprep.subr.mxu0 0.0
    %205 = vmatpush1.msra.mxu0 0.0
    %206 = vmatprep.subr.mxu0 0.0
    %207 = vmatpush1.msra.mxu0 0.0
    %208 = vmatprep.mubr.f32.mxu0 0.0
    %209 = vmatmul.mubr.f32.gmra.mrb[0].mxu0 %v61
    %v210 = vpop.f32.mrb[0].mxu0
    %v211 = vadd.f32 0.0, %v210
    %v212 = vpop.f32.mrb[0].mxu0
    %v213 = vadd.f32 0.0, %v212
    %214 = vmatprep.mubr.f32.mxu0 0.0
    %215 = vmatmul.mubr.f32.gmra.mrb[0].mxu0 %v62
    %v216 = vpop.f32.mrb[0].mxu0
    %v217 = vadd.f32 0.0, %v216
    %v218 = vpop.f32.mrb[0].mxu0
    %v219 = vadd.f32 0.0, %v218
    %220 = vmatprep.mubr.f32.mxu0 0.0
    %221 = vmatmul.mubr.f32.gmra.mrb[0].mxu0 %v63
    %v222 = vpop.f32.mrb[0].mxu0
    %v223 = vadd.f32 0.0, %v222
    %v224 = vpop.f32.mrb[0].mxu0
    %v225 = vadd.f32 0.0, %v224
    %226 = vmatprep.mubr.f32.mxu0 0.0
    %227 = vmatmul.mubr.f32.gmra.mrb[0].mxu0 %v64
    %v228 = vpop.f32.mrb[0].mxu0
    %v229 = vadd.f32 0.0, %v228
    %v230 = vpop.f32.mrb[0].mxu0
    %v231 = vadd.f32 0.0, %v230
    %232 = vdwg.mxu0
    %233 = vmatprep.subr.mxu0 0.0
    %234 = vmatpush1.msra.mxu0 %v98
    %235 = vmatprep.subr.mxu0 0.0
    %236 = vmatpush1.msra.mxu0 %v101
    %237 = vmatprep.subr.mxu0 0.0
    %238 = vmatpush1.msra.mxu0 %v104
    %239 = vmatprep.subr.mxu0 0.0
    %240 = vmatpush1.msra.mxu0 %v107
    %241 = vmatprep.subr.mxu0 0.0
    %242 = vmatpush1.msra.mxu0 %v110
    %243 = vmatprep.subr.mxu0 0.0
    %244 = vmatpush1.msra.mxu0 %v113
    %245 = vmatprep.subr.mxu0 0.0
    %246 = vmatpush1.msra.mxu0 %v116
    %247 = vmatprep.subr.mxu0 0.0
    %248 = vmatpush1.msra.mxu0 %v119
    %249 = vmatprep.subr.mxu0 0.0
    %250 = vmatpush1.msra.mxu0 %v122
    %251 = vmatprep.subr.mxu0 0.0
    %252 = vmatpush1.msra.mxu0 %v125
    %253 = vmatprep.subr.mxu0 0.0
    %254 = vmatpush1.msra.mxu0 %v128
    %255 = vmatprep.subr.mxu0 0.0
    %256 = vmatpush1.msra.mxu0 %v131
    %257 = vmatprep.subr.mxu0 0.0
    %258 = vmatpush1.msra.mxu0 %v134
    %259 = vmatprep.subr.mxu0 0.0
    %260 = vmatpush1.msra.mxu0 %v137
    %261 = vmatprep.subr.mxu0 0.0
    %262 = vmatpush1.msra.mxu0 %v140
    %263 = vmatprep.subr.mxu0 0.0
    %264 = vmatpush1.msra.mxu0 %v143
    %265 = vmatprep.subr.mxu0 0.0
    %266 = vmatpush1.msra.mxu0 0.0
    %267 = vmatprep.subr.mxu0 0.0
    %268 = vmatpush1.msra.mxu0 0.0
    %269 = vmatprep.subr.mxu0 0.0
    %270 = vmatpush1.msra.mxu0 0.0
    %271 = vmatprep.subr.mxu0 0.0
    %272 = vmatpush1.msra.mxu0 0.0
    %273 = vmatprep.subr.mxu0 0.0
    %274 = vmatpush1.msra.mxu0 0.0
    %275 = vmatprep.subr.mxu0 0.0
    %276 = vmatpush1.msra.mxu0 0.0
    %277 = vmatprep.subr.mxu0 0.0
    %278 = vmatpush1.msra.mxu0 0.0
    %279 = vmatprep.subr.mxu0 0.0
    %280 = vmatpush1.msra.mxu0 0.0
    %281 = vmatprep.subr.mxu0 0.0
    %282 = vmatpush1.msra.mxu0 0.0
    %283 = vmatprep.subr.mxu0 0.0
    %284 = vmatpush1.msra.mxu0 0.0
    %285 = vmatprep.subr.mxu0 0.0
    %286 = vmatpush1.msra.mxu0 0.0
    %287 = vmatprep.subr.mxu0 0.0
    %288 = vmatpush1.msra.mxu0 0.0
    %289 = vmatprep.subr.mxu0 0.0
    %290 = vmatpush1.msra.mxu0 0.0
    %291 = vmatprep.subr.mxu0 0.0
    %292 = vmatpush1.msra.mxu0 0.0
    %293 = vmatprep.subr.mxu0 0.0
    %294 = vmatpush1.msra.mxu0 0.0
    %295 = vmatprep.subr.mxu0 0.0
    %296 = vmatpush1.msra.mxu0 0.0
    %297 = vmatprep.mubr.f32.mxu0 0.0
    %298 = vmatmul.mubr.f32.gmra.mrb[0].mxu0 %v61
    %v299 = vpop.f32.mrb[0].mxu0
    %v300 = vadd.f32 0.0, %v299
    %v301 = vpop.f32.mrb[0].mxu0
    %302 = vmatprep.mubr.f32.mxu0 0.0
    %303 = vmatmul.mubr.f32.gmra.mrb[0].mxu0 %v62
    %v304 = vpop.f32.mrb[0].mxu0
    %v305 = vadd.f32 0.0, %v304
    %v306 = vpop.f32.mrb[0].mxu0
    %307 = vmatprep.mubr.f32.mxu0 0.0
    %308 = vmatmul.mubr.f32.gmra.mrb[0].mxu0 %v63
    %v309 = vpop.f32.mrb[0].mxu0
    %v310 = vadd.f32 0.0, %v309
    %v311 = vpop.f32.mrb[0].mxu0
    %312 = vmatprep.mubr.f32.mxu0 0.0
    %313 = vmatmul.mubr.f32.gmra.mrb[0].mxu0 %v64
    %v314 = vpop.f32.mrb[0].mxu0
    %v315 = vadd.f32 0.0, %v314
    %v316 = vpop.f32.mrb[0].mxu0
    %317 = vdwg.mxu0
    %v318 = vrot.slane %v211, 6
    %v319 = vrot.slane %v217, 6
    %v320 = vrot.slane %v223, 6
    %v321 = vrot.slane %v229, 6
    %vm322 = vcmp.lt.s32.totalorder %v83, 2
    %v323 = vsel %vm322, %v320, %v321
    %v324 = vsel %vm322, %v319, %v320
    %v325 = vsel %vm322, %v318, %v319
    %v326 = vsel %vm322, %v321, %v318
    %v327 = vsel %vm87, %v326, 0.0
    %v328 = vsel %vm88, %v325, 0.0
    %v329 = vsel %vm89, %v324, 0.0
    %v330 = vsel %vm90, %v323, 0.0
    %v331 = vadd.f32 %v213, %v327
    %v332 = vadd.f32 %v219, %v328
    %v333 = vadd.f32 %v225, %v329
    %v334 = vadd.f32 %v231, %v330
    %v335 = vrot.slane %v300, 2
    %v336 = vrot.slane %v305, 2
    %v337 = vrot.slane %v310, 2
    %v338 = vrot.slane %v315, 2
    %vm339 = vcmp.lt.s32.totalorder %v83, 6
    %v340 = vsel %vm339, %v337, %v338
    %v341 = vsel %vm339, %v336, %v337
    %v342 = vsel %vm339, %v335, %v336
    %v343 = vsel %vm339, %v338, %v335
    %v344 = vsel %vm91, %v342, 0.0
    %v345 = vsel %vm92, %v341, 0.0
    %v346 = vsel %vm93, %v340, 0.0
    %v347 = vsel %vm94, %v343, 0.0
    %v348 = vadd.f32 %v331, %v344
    %v349 = vadd.f32 %v332, %v345
    %v350 = vadd.f32 %v333, %v346
    %v351 = vadd.f32 %v334, %v347
    %v352 = vadd.f32 %v348, %v349
    %v353 = vadd.f32 %v352, %v350
    %v354 = vadd.f32 %v353, %v351
    %v355 = vrot.slane %v354, 4
    %v356 = vadd.f32 %v354, %v355
    %v357 = vrot.slane %v356, 2
    %v358 = vadd.f32 %v356, %v357
    %v359 = vrot.slane %v358, 1
    %v360 = vadd.f32 %v358, %v359
    %v361 = vmul.f32 %v348, %v348
    %v362 = vmul.f32 %v349, %v349
    %v363 = vmul.f32 %v350, %v350
    %v364 = vmul.f32 %v351, %v351
    %v365 = vadd.f32 %v361, %v362
    %v366 = vadd.f32 %v365, %v363
    %v367 = vadd.f32 %v366, %v364
    %v368 = vrot.slane %v367, 4
    %v369 = vadd.f32 %v367, %v368
    %v370 = vrot.slane %v369, 2
    %v371 = vadd.f32 %v369, %v370
    %v372 = vrot.slane %v371, 1
    %v373 = vadd.f32 %v371, %v372
    %v374 = vsel %vm95, %v360, %v373
    %375 = vmatprep.subr.mxu0 0.0
    %376 = vmatpush1.msra.mxu0 %v65
    %377 = vmatprep.subr.mxu0 0.0
    %378 = vmatpush1.msra.mxu0 %v66
    %379 = vmatprep.subr.mxu0 0.0
    %380 = vmatpush1.msra.mxu0 %v67
    %381 = vmatprep.subr.mxu0 0.0
    %382 = vmatpush1.msra.mxu0 %v68
    %383 = vmatprep.subr.mxu0 0.0
    %384 = vmatpush1.msra.mxu0 %v69
    %385 = vmatprep.subr.mxu0 0.0
    %386 = vmatpush1.msra.mxu0 %v70
    %387 = vmatprep.subr.mxu0 0.0
    %388 = vmatpush1.msra.mxu0 %v71
    %389 = vmatprep.subr.mxu0 0.0
    %390 = vmatpush1.msra.mxu0 %v72
    %391 = vmatprep.subr.mxu0 0.0
    %392 = vmatpush1.msra.mxu0 %v73
    %393 = vmatprep.subr.mxu0 0.0
    %394 = vmatpush1.msra.mxu0 %v74
    %395 = vmatprep.subr.mxu0 0.0
    %396 = vmatpush1.msra.mxu0 %v75
    %397 = vmatprep.subr.mxu0 0.0
    %398 = vmatpush1.msra.mxu0 %v76
    %399 = vmatprep.subr.mxu0 0.0
    %400 = vmatpush1.msra.mxu0 %v77
    %401 = vmatprep.subr.mxu0 0.0
    %402 = vmatpush1.msra.mxu0 %v78
    %403 = vmatprep.subr.mxu0 0.0
    %404 = vmatpush1.msra.mxu0 %v79
    %405 = vmatprep.subr.mxu0 0.0
    %406 = vmatpush1.msra.mxu0 %v80
    %407 = vmatprep.subr.mxu0 0.0
    %408 = vmatpush1.msra.mxu0 0.0
    %409 = vmatprep.subr.mxu0 0.0
    %410 = vmatpush1.msra.mxu0 0.0
    %411 = vmatprep.subr.mxu0 0.0
    %412 = vmatpush1.msra.mxu0 0.0
    %413 = vmatprep.subr.mxu0 0.0
    %414 = vmatpush1.msra.mxu0 0.0
    %415 = vmatprep.subr.mxu0 0.0
    %416 = vmatpush1.msra.mxu0 0.0
    %417 = vmatprep.subr.mxu0 0.0
    %418 = vmatpush1.msra.mxu0 0.0
    %419 = vmatprep.subr.mxu0 0.0
    %420 = vmatpush1.msra.mxu0 0.0
    %421 = vmatprep.subr.mxu0 0.0
    %422 = vmatpush1.msra.mxu0 0.0
    %423 = vmatprep.subr.mxu0 0.0
    %424 = vmatpush1.msra.mxu0 0.0
    %425 = vmatprep.subr.mxu0 0.0
    %426 = vmatpush1.msra.mxu0 0.0
    %427 = vmatprep.subr.mxu0 0.0
    %428 = vmatpush1.msra.mxu0 0.0
    %429 = vmatprep.subr.mxu0 0.0
    %430 = vmatpush1.msra.mxu0 0.0
    %431 = vmatprep.subr.mxu0 0.0
    %432 = vmatpush1.msra.mxu0 0.0
    %433 = vmatprep.subr.mxu0 0.0
    %434 = vmatpush1.msra.mxu0 0.0
    %435 = vmatprep.subr.mxu0 0.0
    %436 = vmatpush1.msra.mxu0 0.0
    %437 = vmatprep.subr.mxu0 0.0
    %438 = vmatpush1.msra.mxu0 0.0
    %439 = vmatprep.mubr.f32.mxu0 0.0
    %440 = vmatmul.mubr.f32.gmra.mrb[0].mxu0 %v374
    %v441 = vpop.f32.mrb[0].mxu0
    %v442 = vadd.f32 0.0, %v441
    %v443 = vpop.f32.mrb[0].mxu0
    %444 = vdwg.mxu0
    %v445 = vmul.f32 %v442, 0.001953125
    %v446 = vmul.f32 %v445, %v445
    %v448 = vrot.slane %v446, 7
    %v450 = vsub.f32 %v445, %v448
    %v451 = vld [vmem:[%s3] sm:$0x1]
    %v452 = vadd.f32 %v450, 1e-05
    %v453 = vrsqrt.pop %v452
    %v456 = vunpack.c.l.s4 1966171168
    %v457 = vunpack.c.0.s8 %v456
    %v458 = vlaneseq
    %v459 = vshrl.u32 %v458, 7
    %v460 = vsub.s32 %v457, %v459
    %v461 = vrot.slane %v453, %v460
    %v462 = vcombine.high %v461, %v461
    %v464 = vunpack.c.l.s4 1966171168
    %v465 = vunpack.c.0.s8 %v464
    %v466 = vlaneseq
    %v467 = vshrl.u32 %v466, 7
    %v468 = vsub.s32 %v465, %v467
    %v469 = vrot.slane %v462, %v468
    %v471 = vmul.f32 %v451, %v469
    %v472 = vld [vmem:[%s4] sm:$0x1]
    %v473 = vmul.f32 %v445, %v471
    %v474 = vsub.f32 %v472, %v473
    %v476 = vlaneseq
    %v477 = vshrl.u32 %v476, 7
    %v478 = vsub.s32 0, %v477
    %v479 = vrot.slane %v471, %v478
    %v482 = vlaneseq
    %v483 = vshrl.u32 %v482, 7
    %v484 = vsub.s32 0, %v483
    %v485 = vrot.slane %v474, %v484
    %v487 = vsel %vm95, %v479, %v485
    %vm488 = vcmask 64512
    %v490 = vsel %vm488, %v487, 0
    %492 = vmatprep.subr.mxu0 0.0
    %493 = vmatpush1.msra.mxu0 %v81
    %494 = vmatprep.subr.mxu0 0.0
    %495 = vmatpush1.msra.mxu0 0.0
    %496 = vmatprep.subr.mxu0 0.0
    %497 = vmatpush1.msra.mxu0 0.0
    %498 = vmatprep.subr.mxu0 0.0
    %499 = vmatpush1.msra.mxu0 0.0
    %500 = vmatprep.subr.mxu0 0.0
    %501 = vmatpush1.msra.mxu0 0.0
    %502 = vmatprep.subr.mxu0 0.0
    %503 = vmatpush1.msra.mxu0 0.0
    %504 = vmatprep.subr.mxu0 0.0
    %505 = vmatpush1.msra.mxu0 0.0
    %506 = vmatprep.subr.mxu0 0.0
    %507 = vmatpush1.msra.mxu0 0.0
    %508 = vmatprep.subr.mxu0 0.0
    %509 = vmatpush1.msra.mxu0 0.0
    %510 = vmatprep.subr.mxu0 0.0
    %511 = vmatpush1.msra.mxu0 0.0
    %512 = vmatprep.subr.mxu0 0.0
    %513 = vmatpush1.msra.mxu0 0.0
    %514 = vmatprep.subr.mxu0 0.0
    %515 = vmatpush1.msra.mxu0 0.0
    %516 = vmatprep.subr.mxu0 0.0
    %517 = vmatpush1.msra.mxu0 0.0
    %518 = vmatprep.subr.mxu0 0.0
    %519 = vmatpush1.msra.mxu0 0.0
    %520 = vmatprep.subr.mxu0 0.0
    %521 = vmatpush1.msra.mxu0 0.0
    %522 = vmatprep.subr.mxu0 0.0
    %523 = vmatpush1.msra.mxu0 0.0
    %524 = vmatprep.subr.mxu0 0.0
    %525 = vmatpush1.msra.mxu0 0.0
    %526 = vmatprep.subr.mxu0 0.0
    %527 = vmatpush1.msra.mxu0 0.0
    %528 = vmatprep.subr.mxu0 0.0
    %529 = vmatpush1.msra.mxu0 0.0
    %530 = vmatprep.subr.mxu0 0.0
    %531 = vmatpush1.msra.mxu0 0.0
    %532 = vmatprep.subr.mxu0 0.0
    %533 = vmatpush1.msra.mxu0 0.0
    %534 = vmatprep.subr.mxu0 0.0
    %535 = vmatpush1.msra.mxu0 0.0
    %536 = vmatprep.subr.mxu0 0.0
    %537 = vmatpush1.msra.mxu0 0.0
    %538 = vmatprep.subr.mxu0 0.0
    %539 = vmatpush1.msra.mxu0 0.0
    %540 = vmatprep.subr.mxu0 0.0
    %541 = vmatpush1.msra.mxu0 0.0
    %542 = vmatprep.subr.mxu0 0.0
    %543 = vmatpush1.msra.mxu0 0.0
    %544 = vmatprep.subr.mxu0 0.0
    %545 = vmatpush1.msra.mxu0 0.0
    %546 = vmatprep.subr.mxu0 0.0
    %547 = vmatpush1.msra.mxu0 0.0
    %548 = vmatprep.subr.mxu0 0.0
    %549 = vmatpush1.msra.mxu0 0.0
    %550 = vmatprep.subr.mxu0 0.0
    %551 = vmatpush1.msra.mxu0 0.0
    %552 = vmatprep.subr.mxu0 0.0
    %553 = vmatpush1.msra.mxu0 0.0
    %554 = vmatprep.subr.mxu0 0.0
    %555 = vmatpush1.msra.mxu0 0.0
    %556 = vmatprep.mubr.f32.mxu0 0.0
    %557 = vmatmul.mubr.f32.gmra.mrb[0].mxu0 %v490
    %v558 = vpop.f32.mrb[0].mxu0
    %v559 = vadd.f32 0.0, %v558
    %v560 = vpop.f32.mrb[0].mxu0
    %561 = vdwg.mxu0
    %v562 = vlaneseq
    %v563 = vshrl.u32 %v562, 7
    %v564 = vsub.s32 0, %v563
    %v565 = vrot.slane %v559, %v564
    %v566 = vmul.f32 %v348, %v565
    %v567 = vmul.f32 %v349, %v565
    %v568 = vmul.f32 %v350, %v565
    %v569 = vmul.f32 %v351, %v565
    %v570 = vlaneseq
    %v571 = vshrl.u32 %v570, 7
    %v572 = vsub.s32 1, %v571
    %v573 = vrot.slane %v559, %v572
    %v574 = vadd.f32 %v566, %v573
    %v575 = vadd.f32 %v567, %v573
    %v576 = vadd.f32 %v568, %v573
    %v577 = vadd.f32 %v569, %v573
    %v578 = vmax.f32 %v574, 0.0
    %v579 = vmax.f32 %v575, 0.0
    %v580 = vmax.f32 %v576, 0.0
    %v581 = vmax.f32 %v577, 0.0
    %v582 = vld [vmem:[#allocation5] sm:$0xff]
    %v583 = vld [vmem:[#allocation5 + $0x8] sm:$0xff]
    %v584 = vld [vmem:[#allocation5 + $0x10] sm:$0xff]
    %v585 = vld [vmem:[#allocation5 + $0x18] sm:$0xff]
    %v586 = vld [vmem:[#allocation5 + $0x20] sm:$0xff]
    %v587 = vld [vmem:[#allocation5 + $0x28] sm:$0xff]
    %v588 = vld [vmem:[#allocation5 + $0x30] sm:$0xff]
    %v589 = vld [vmem:[#allocation5 + $0x38] sm:$0xff]
    %v590 = vld [vmem:[#allocation5 + $0x40] sm:$0xff]
    %v591 = vld [vmem:[#allocation5 + $0x48] sm:$0xff]
    %v592 = vld [vmem:[#allocation5 + $0x50] sm:$0xff]
    %v593 = vld [vmem:[#allocation5 + $0x58] sm:$0xff]
    %v594 = vld [vmem:[#allocation5 + $0x60] sm:$0xff]
    %v595 = vld [vmem:[#allocation5 + $0x68] sm:$0xff]
    %v596 = vld [vmem:[#allocation5 + $0x70] sm:$0xff]
    %v597 = vld [vmem:[#allocation5 + $0x78] sm:$0xff]
    %v598 = vld [vmem:[#allocation5 + $0x80] sm:$0xff]
    %v599 = vld [vmem:[#allocation5 + $0x88] sm:$0xff]
    %v600 = vld [vmem:[#allocation5 + $0x90] sm:$0xff]
    %v601 = vld [vmem:[#allocation5 + $0x98] sm:$0xff]
    %v602 = vld [vmem:[#allocation5 + $0xa0] sm:$0xff]
    %v603 = vld [vmem:[#allocation5 + $0xa8] sm:$0xff]
    %v604 = vld [vmem:[#allocation5 + $0xb0] sm:$0xff]
    %v605 = vld [vmem:[#allocation5 + $0xb8] sm:$0xff]
    %v606 = vld [vmem:[#allocation5 + $0xc0] sm:$0xff]
    %v607 = vld [vmem:[#allocation5 + $0xc8] sm:$0xff]
    %v608 = vld [vmem:[#allocation5 + $0xd0] sm:$0xff]
    %v609 = vld [vmem:[#allocation5 + $0xd8] sm:$0xff]
    %v610 = vld [vmem:[#allocation5 + $0xe0] sm:$0xff]
    %v611 = vld [vmem:[#allocation5 + $0xe8] sm:$0xff]
    %v612 = vld [vmem:[#allocation5 + $0xf0] sm:$0xff]
    %v613 = vld [vmem:[#allocation5 + $0xf8] sm:$0xff]
    %v614 = vld [vmem:[#allocation5 + $0x100] sm:$0xff]
    %v615 = vld [vmem:[#allocation5 + $0x108] sm:$0xff]
    %v616 = vld [vmem:[#allocation5 + $0x110] sm:$0xff]
    %v617 = vld [vmem:[#allocation5 + $0x118] sm:$0xff]
    %v618 = vld [vmem:[#allocation5 + $0x120] sm:$0xff]
    %v619 = vld [vmem:[#allocation5 + $0x128] sm:$0xff]
    %v620 = vld [vmem:[#allocation5 + $0x130] sm:$0xff]
    %v621 = vld [vmem:[#allocation5 + $0x138] sm:$0xff]
    %v622 = vld [vmem:[#allocation5 + $0x140] sm:$0xff]
    %v623 = vld [vmem:[#allocation5 + $0x148] sm:$0xff]
    %v624 = vld [vmem:[#allocation5 + $0x150] sm:$0xff]
    %v625 = vld [vmem:[#allocation5 + $0x158] sm:$0xff]
    %v626 = vld [vmem:[#allocation5 + $0x160] sm:$0xff]
    %v627 = vld [vmem:[#allocation5 + $0x168] sm:$0xff]
    %v628 = vld [vmem:[#allocation5 + $0x170] sm:$0xff]
    %v629 = vld [vmem:[#allocation5 + $0x178] sm:$0xff]
    %630 = vmatprep.subr.mxu0 %v583
    %631 = vmatpush1.msra.mxu0 %v582
    %632 = vmatprep.subr.mxu0 %v586
    %633 = vmatpush1.msra.mxu0 %v585
    %634 = vmatprep.subr.mxu0 %v589
    %635 = vmatpush1.msra.mxu0 %v588
    %636 = vmatprep.subr.mxu0 %v592
    %637 = vmatpush1.msra.mxu0 %v591
    %638 = vmatprep.subr.mxu0 %v595
    %639 = vmatpush1.msra.mxu0 %v594
    %640 = vmatprep.subr.mxu0 %v598
    %641 = vmatpush1.msra.mxu0 %v597
    %642 = vmatprep.subr.mxu0 %v601
    %643 = vmatpush1.msra.mxu0 %v600
    %644 = vmatprep.subr.mxu0 %v604
    %645 = vmatpush1.msra.mxu0 %v603
    %646 = vmatprep.subr.mxu0 %v607
    %647 = vmatpush1.msra.mxu0 %v606
    %648 = vmatprep.subr.mxu0 %v610
    %649 = vmatpush1.msra.mxu0 %v609
    %650 = vmatprep.subr.mxu0 %v613
    %651 = vmatpush1.msra.mxu0 %v612
    %652 = vmatprep.subr.mxu0 %v616
    %653 = vmatpush1.msra.mxu0 %v615
    %654 = vmatprep.subr.mxu0 %v619
    %655 = vmatpush1.msra.mxu0 %v618
    %656 = vmatprep.subr.mxu0 %v622
    %657 = vmatpush1.msra.mxu0 %v621
    %658 = vmatprep.subr.mxu0 %v625
    %659 = vmatpush1.msra.mxu0 %v624
    %660 = vmatprep.subr.mxu0 %v628
    %661 = vmatpush1.msra.mxu0 %v627
    %662 = vmatprep.subr.mxu0 0.0
    %663 = vmatpush1.msra.mxu0 0.0
    %664 = vmatprep.subr.mxu0 0.0
    %665 = vmatpush1.msra.mxu0 0.0
    %666 = vmatprep.subr.mxu0 0.0
    %667 = vmatpush1.msra.mxu0 0.0
    %668 = vmatprep.subr.mxu0 0.0
    %669 = vmatpush1.msra.mxu0 0.0
    %670 = vmatprep.subr.mxu0 0.0
    %671 = vmatpush1.msra.mxu0 0.0
    %672 = vmatprep.subr.mxu0 0.0
    %673 = vmatpush1.msra.mxu0 0.0
    %674 = vmatprep.subr.mxu0 0.0
    %675 = vmatpush1.msra.mxu0 0.0
    %676 = vmatprep.subr.mxu0 0.0
    %677 = vmatpush1.msra.mxu0 0.0
    %678 = vmatprep.subr.mxu0 0.0
    %679 = vmatpush1.msra.mxu0 0.0
    %680 = vmatprep.subr.mxu0 0.0
    %681 = vmatpush1.msra.mxu0 0.0
    %682 = vmatprep.subr.mxu0 0.0
    %683 = vmatpush1.msra.mxu0 0.0
    %684 = vmatprep.subr.mxu0 0.0
    %685 = vmatpush1.msra.mxu0 0.0
    %686 = vmatprep.subr.mxu0 0.0
    %687 = vmatpush1.msra.mxu0 0.0
    %688 = vmatprep.subr.mxu0 0.0
    %689 = vmatpush1.msra.mxu0 0.0
    %690 = vmatprep.subr.mxu0 0.0
    %691 = vmatpush1.msra.mxu0 0.0
    %692 = vmatprep.subr.mxu0 0.0
    %693 = vmatpush1.msra.mxu0 0.0
    %694 = vmatprep.mubr.f32.mxu0 0.0
    %695 = vmatmul.mubr.f32.gmra.mrb[0].mxu0 %v578
    %v696 = vpop.f32.mrb[0].mxu0
    %v697 = vadd.f32 0.0, %v696
    %v698 = vpop.f32.mrb[0].mxu0
    %v699 = vadd.f32 0.0, %v698
    %700 = vmatprep.mubr.f32.mxu0 0.0
    %701 = vmatmul.mubr.f32.gmra.mrb[0].mxu0 %v579
    %v702 = vpop.f32.mrb[0].mxu0
    %v703 = vadd.f32 0.0, %v702
    %v704 = vpop.f32.mrb[0].mxu0
    %v705 = vadd.f32 0.0, %v704
    %706 = vmatprep.mubr.f32.mxu0 0.0
    %707 = vmatmul.mubr.f32.gmra.mrb[0].mxu0 %v580
    %v708 = vpop.f32.mrb[0].mxu0
    %v709 = vadd.f32 0.0, %v708
    %v710 = vpop.f32.mrb[0].mxu0
    %v711 = vadd.f32 0.0, %v710
    %712 = vmatprep.mubr.f32.mxu0 0.0
    %713 = vmatmul.mubr.f32.gmra.mrb[0].mxu0 %v581
    %v714 = vpop.f32.mrb[0].mxu0
    %v715 = vadd.f32 0.0, %v714
    %v716 = vpop.f32.mrb[0].mxu0
    %v717 = vadd.f32 0.0, %v716
    %718 = vdwg.mxu0
    %719 = vmatprep.subr.mxu0 0.0
    %720 = vmatpush1.msra.mxu0 %v584
    %721 = vmatprep.subr.mxu0 0.0
    %722 = vmatpush1.msra.mxu0 %v587
    %723 = vmatprep.subr.mxu0 0.0
    %724 = vmatpush1.msra.mxu0 %v590
    %725 = vmatprep.subr.mxu0 0.0
    %726 = vmatpush1.msra.mxu0 %v593
    %727 = vmatprep.subr.mxu0 0.0
    %728 = vmatpush1.msra.mxu0 %v596
    %729 = vmatprep.subr.mxu0 0.0
    %730 = vmatpush1.msra.mxu0 %v599
    %731 = vmatprep.subr.mxu0 0.0
    %732 = vmatpush1.msra.mxu0 %v602
    %733 = vmatprep.subr.mxu0 0.0
    %734 = vmatpush1.msra.mxu0 %v605
    %735 = vmatprep.subr.mxu0 0.0
    %736 = vmatpush1.msra.mxu0 %v608
    %737 = vmatprep.subr.mxu0 0.0
    %738 = vmatpush1.msra.mxu0 %v611
    %739 = vmatprep.subr.mxu0 0.0
    %740 = vmatpush1.msra.mxu0 %v614
    %741 = vmatprep.subr.mxu0 0.0
    %742 = vmatpush1.msra.mxu0 %v617
    %743 = vmatprep.subr.mxu0 0.0
    %744 = vmatpush1.msra.mxu0 %v620
    %745 = vmatprep.subr.mxu0 0.0
    %746 = vmatpush1.msra.mxu0 %v623
    %747 = vmatprep.subr.mxu0 0.0
    %748 = vmatpush1.msra.mxu0 %v626
    %749 = vmatprep.subr.mxu0 0.0
    %750 = vmatpush1.msra.mxu0 %v629
    %751 = vmatprep.subr.mxu0 0.0
    %752 = vmatpush1.msra.mxu0 0.0
    %753 = vmatprep.subr.mxu0 0.0
    %754 = vmatpush1.msra.mxu0 0.0
    %755 = vmatprep.subr.mxu0 0.0
    %756 = vmatpush1.msra.mxu0 0.0
    %757 = vmatprep.subr.mxu0 0.0
    %758 = vmatpush1.msra.mxu0 0.0
    %759 = vmatprep.subr.mxu0 0.0
    %760 = vmatpush1.msra.mxu0 0.0
    %761 = vmatprep.subr.mxu0 0.0
    %762 = vmatpush1.msra.mxu0 0.0
    %763 = vmatprep.subr.mxu0 0.0
    %764 = vmatpush1.msra.mxu0 0.0
    %765 = vmatprep.subr.mxu0 0.0
    %766 = vmatpush1.msra.mxu0 0.0
    %767 = vmatprep.subr.mxu0 0.0
    %768 = vmatpush1.msra.mxu0 0.0
    %769 = vmatprep.subr.mxu0 0.0
    %770 = vmatpush1.msra.mxu0 0.0
    %771 = vmatprep.subr.mxu0 0.0
    %772 = vmatpush1.msra.mxu0 0.0
    %773 = vmatprep.subr.mxu0 0.0
    %774 = vmatpush1.msra.mxu0 0.0
    %775 = vmatprep.subr.mxu0 0.0
    %776 = vmatpush1.msra.mxu0 0.0
    %777 = vmatprep.subr.mxu0 0.0
    %778 = vmatpush1.msra.mxu0 0.0
    %779 = vmatprep.subr.mxu0 0.0
    %780 = vmatpush1.msra.mxu0 0.0
    %781 = vmatprep.subr.mxu0 0.0
    %782 = vmatpush1.msra.mxu0 0.0
    %783 = vmatprep.mubr.f32.mxu0 0.0
    %784 = vmatmul.mubr.f32.gmra.mrb[0].mxu0 %v578
    %v785 = vpop.f32.mrb[0].mxu0
    %v786 = vadd.f32 0.0, %v785
    %v787 = vpop.f32.mrb[0].mxu0
    %788 = vmatprep.mubr.f32.mxu0 0.0
    %789 = vmatmul.mubr.f32.gmra.mrb[0].mxu0 %v579
    %v790 = vpop.f32.mrb[0].mxu0
    %v791 = vadd.f32 0.0, %v790
    %v792 = vpop.f32.mrb[0].mxu0
    %793 = vmatprep.mubr.f32.mxu0 0.0
    %794 = vmatmul.mubr.f32.gmra.mrb[0].mxu0 %v580
    %v795 = vpop.f32.mrb[0].mxu0
    %v796 = vadd.f32 0.0, %v795
    %v797 = vpop.f32.mrb[0].mxu0
    %798 = vmatprep.mubr.f32.mxu0 0.0
    %799 = vmatmul.mubr.f32.gmra.mrb[0].mxu0 %v581
    %v800 = vpop.f32.mrb[0].mxu0
    %v801 = vadd.f32 0.0, %v800
    %v802 = vpop.f32.mrb[0].mxu0
    %803 = vdwg.mxu0
    %v804 = vrot.slane %v697, 6
    %v805 = vrot.slane %v703, 6
    %v806 = vrot.slane %v709, 6
    %v807 = vrot.slane %v715, 6
    %v808 = vsel %vm322, %v806, %v807
    %v809 = vsel %vm322, %v805, %v806
    %v810 = vsel %vm322, %v804, %v805
    %v811 = vsel %vm322, %v807, %v804
    %v812 = vsel %vm87, %v811, 0.0
    %v813 = vsel %vm88, %v810, 0.0
    %v814 = vsel %vm89, %v809, 0.0
    %v815 = vsel %vm90, %v808, 0.0
    %v816 = vadd.f32 %v699, %v812
    %v817 = vadd.f32 %v705, %v813
    %v818 = vadd.f32 %v711, %v814
    %v819 = vadd.f32 %v717, %v815
    %v820 = vrot.slane %v786, 2
    %v821 = vrot.slane %v791, 2
    %v822 = vrot.slane %v796, 2
    %v823 = vrot.slane %v801, 2
    %v824 = vsel %vm339, %v822, %v823
    %v825 = vsel %vm339, %v821, %v822
    %v826 = vsel %vm339, %v820, %v821
    %v827 = vsel %vm339, %v823, %v820
    %v828 = vsel %vm91, %v826, 0.0
    %v829 = vsel %vm92, %v825, 0.0
    %v830 = vsel %vm93, %v824, 0.0
    %v831 = vsel %vm94, %v827, 0.0
    %v832 = vadd.f32 %v816, %v828
    %v833 = vadd.f32 %v817, %v829
    %v834 = vadd.f32 %v818, %v830
    %v835 = vadd.f32 %v819, %v831
    %v836 = vadd.f32 %v832, %v833
    %v837 = vadd.f32 %v836, %v834
    %v838 = vadd.f32 %v837, %v835
    %v839 = vrot.slane %v838, 4
    %v840 = vadd.f32 %v838, %v839
    %v841 = vrot.slane %v840, 2
    %v842 = vadd.f32 %v840, %v841
    %v843 = vrot.slane %v842, 1
    %v844 = vadd.f32 %v842, %v843
    %v845 = vmul.f32 %v832, %v832
    %v846 = vmul.f32 %v833, %v833
    %v847 = vmul.f32 %v834, %v834
    %v848 = vmul.f32 %v835, %v835
    %v849 = vadd.f32 %v845, %v846
    %v850 = vadd.f32 %v849, %v847
    %v851 = vadd.f32 %v850, %v848
    %v852 = vrot.slane %v851, 4
    %v853 = vadd.f32 %v851, %v852
    %v854 = vrot.slane %v853, 2
    %v855 = vadd.f32 %v853, %v854
    %v856 = vrot.slane %v855, 1
    %v857 = vadd.f32 %v855, %v856
    %v858 = vsel %vm95, %v844, %v857
    %859 = vmatprep.subr.mxu0 0.0
    %860 = vmatpush1.msra.mxu0 %v65
    %861 = vmatprep.subr.mxu0 0.0
    %862 = vmatpush1.msra.mxu0 %v66
    %863 = vmatprep.subr.mxu0 0.0
    %864 = vmatpush1.msra.mxu0 %v67
    %865 = vmatprep.subr.mxu0 0.0
    %866 = vmatpush1.msra.mxu0 %v68
    %867 = vmatprep.subr.mxu0 0.0
    %868 = vmatpush1.msra.mxu0 %v69
    %869 = vmatprep.subr.mxu0 0.0
    %870 = vmatpush1.msra.mxu0 %v70
    %871 = vmatprep.subr.mxu0 0.0
    %872 = vmatpush1.msra.mxu0 %v71
    %873 = vmatprep.subr.mxu0 0.0
    %874 = vmatpush1.msra.mxu0 %v72
    %875 = vmatprep.subr.mxu0 0.0
    %876 = vmatpush1.msra.mxu0 %v73
    %877 = vmatprep.subr.mxu0 0.0
    %878 = vmatpush1.msra.mxu0 %v74
    %879 = vmatprep.subr.mxu0 0.0
    %880 = vmatpush1.msra.mxu0 %v75
    %881 = vmatprep.subr.mxu0 0.0
    %882 = vmatpush1.msra.mxu0 %v76
    %883 = vmatprep.subr.mxu0 0.0
    %884 = vmatpush1.msra.mxu0 %v77
    %885 = vmatprep.subr.mxu0 0.0
    %886 = vmatpush1.msra.mxu0 %v78
    %887 = vmatprep.subr.mxu0 0.0
    %888 = vmatpush1.msra.mxu0 %v79
    %889 = vmatprep.subr.mxu0 0.0
    %890 = vmatpush1.msra.mxu0 %v80
    %891 = vmatprep.subr.mxu0 0.0
    %892 = vmatpush1.msra.mxu0 0.0
    %893 = vmatprep.subr.mxu0 0.0
    %894 = vmatpush1.msra.mxu0 0.0
    %895 = vmatprep.subr.mxu0 0.0
    %896 = vmatpush1.msra.mxu0 0.0
    %897 = vmatprep.subr.mxu0 0.0
    %898 = vmatpush1.msra.mxu0 0.0
    %899 = vmatprep.subr.mxu0 0.0
    %900 = vmatpush1.msra.mxu0 0.0
    %901 = vmatprep.subr.mxu0 0.0
    %902 = vmatpush1.msra.mxu0 0.0
    %903 = vmatprep.subr.mxu0 0.0
    %904 = vmatpush1.msra.mxu0 0.0
    %905 = vmatprep.subr.mxu0 0.0
    %906 = vmatpush1.msra.mxu0 0.0
    %907 = vmatprep.subr.mxu0 0.0
    %908 = vmatpush1.msra.mxu0 0.0
    %909 = vmatprep.subr.mxu0 0.0
    %910 = vmatpush1.msra.mxu0 0.0
    %911 = vmatprep.subr.mxu0 0.0
    %912 = vmatpush1.msra.mxu0 0.0
    %913 = vmatprep.subr.mxu0 0.0
    %914 = vmatpush1.msra.mxu0 0.0
    %915 = vmatprep.subr.mxu0 0.0
    %916 = vmatpush1.msra.mxu0 0.0
    %917 = vmatprep.subr.mxu0 0.0
    %918 = vmatpush1.msra.mxu0 0.0
    %919 = vmatprep.subr.mxu0 0.0
    %920 = vmatpush1.msra.mxu0 0.0
    %921 = vmatprep.subr.mxu0 0.0
    %922 = vmatpush1.msra.mxu0 0.0
    %923 = vmatprep.mubr.f32.mxu0 0.0
    %924 = vmatmul.mubr.f32.gmra.mrb[0].mxu0 %v858
    %v925 = vpop.f32.mrb[0].mxu0
    %v926 = vadd.f32 0.0, %v925
    %v927 = vpop.f32.mrb[0].mxu0
    %928 = vdwg.mxu0
    %v929 = vmul.f32 %v926, 0.001953125
    %v930 = vmul.f32 %v929, %v929
    %v932 = vrot.slane %v930, 7
    %v934 = vsub.f32 %v929, %v932
    %v935 = vld [vmem:[%s5] sm:$0x1]
    %v936 = vadd.f32 %v934, 1e-05
    %v937 = vrsqrt.pop %v936
    %v940 = vunpack.c.l.s4 1966171168
    %v941 = vunpack.c.0.s8 %v940
    %v942 = vlaneseq
    %v943 = vshrl.u32 %v942, 7
    %v944 = vsub.s32 %v941, %v943
    %v945 = vrot.slane %v937, %v944
    %v946 = vcombine.high %v945, %v945
    %v948 = vunpack.c.l.s4 1966171168
    %v949 = vunpack.c.0.s8 %v948
    %v950 = vlaneseq
    %v951 = vshrl.u32 %v950, 7
    %v952 = vsub.s32 %v949, %v951
    %v953 = vrot.slane %v946, %v952
    %v955 = vmul.f32 %v935, %v953
    %v956 = vld [vmem:[%s6] sm:$0x1]
    %v957 = vmul.f32 %v929, %v955
    %v958 = vsub.f32 %v956, %v957
    %v960 = vlaneseq
    %v961 = vshrl.u32 %v960, 7
    %v962 = vsub.s32 0, %v961
    %v963 = vrot.slane %v955, %v962
    %v966 = vlaneseq
    %v967 = vshrl.u32 %v966, 7
    %v968 = vsub.s32 0, %v967
    %v969 = vrot.slane %v958, %v968
    %v971 = vsel %vm95, %v963, %v969
    %v973 = vsel %vm488, %v971, 0
    %975 = vmatprep.subr.mxu0 0.0
    %976 = vmatpush1.msra.mxu0 %v81
    %977 = vmatprep.subr.mxu0 0.0
    %978 = vmatpush1.msra.mxu0 0.0
    %979 = vmatprep.subr.mxu0 0.0
    %980 = vmatpush1.msra.mxu0 0.0
    %981 = vmatprep.subr.mxu0 0.0
    %982 = vmatpush1.msra.mxu0 0.0
    %983 = vmatprep.subr.mxu0 0.0
    %984 = vmatpush1.msra.mxu0 0.0
    %985 = vmatprep.subr.mxu0 0.0
    %986 = vmatpush1.msra.mxu0 0.0
    %987 = vmatprep.subr.mxu0 0.0
    %988 = vmatpush1.msra.mxu0 0.0
    %989 = vmatprep.subr.mxu0 0.0
    %990 = vmatpush1.msra.mxu0 0.0
    %991 = vmatprep.subr.mxu0 0.0
    %992 = vmatpush1.msra.mxu0 0.0
    %993 = vmatprep.subr.mxu0 0.0
    %994 = vmatpush1.msra.mxu0 0.0
    %995 = vmatprep.subr.mxu0 0.0
    %996 = vmatpush1.msra.mxu0 0.0
    %997 = vmatprep.subr.mxu0 0.0
    %998 = vmatpush1.msra.mxu0 0.0
    %999 = vmatprep.subr.mxu0 0.0
    %1000 = vmatpush1.msra.mxu0 0.0
    %1001 = vmatprep.subr.mxu0 0.0
    %1002 = vmatpush1.msra.mxu0 0.0
    %1003 = vmatprep.subr.mxu0 0.0
    %1004 = vmatpush1.msra.mxu0 0.0
    %1005 = vmatprep.subr.mxu0 0.0
    %1006 = vmatpush1.msra.mxu0 0.0
    %1007 = vmatprep.subr.mxu0 0.0
    %1008 = vmatpush1.msra.mxu0 0.0
    %1009 = vmatprep.subr.mxu0 0.0
    %1010 = vmatpush1.msra.mxu0 0.0
    %1011 = vmatprep.subr.mxu0 0.0
    %1012 = vmatpush1.msra.mxu0 0.0
    %1013 = vmatprep.subr.mxu0 0.0
    %1014 = vmatpush1.msra.mxu0 0.0
    %1015 = vmatprep.subr.mxu0 0.0
    %1016 = vmatpush1.msra.mxu0 0.0
    %1017 = vmatprep.subr.mxu0 0.0
    %1018 = vmatpush1.msra.mxu0 0.0
    %1019 = vmatprep.subr.mxu0 0.0
    %1020 = vmatpush1.msra.mxu0 0.0
    %1021 = vmatprep.subr.mxu0 0.0
    %1022 = vmatpush1.msra.mxu0 0.0
    %1023 = vmatprep.subr.mxu0 0.0
    %1024 = vmatpush1.msra.mxu0 0.0
    %1025 = vmatprep.subr.mxu0 0.0
    %1026 = vmatpush1.msra.mxu0 0.0
    %1027 = vmatprep.subr.mxu0 0.0
    %1028 = vmatpush1.msra.mxu0 0.0
    %1029 = vmatprep.subr.mxu0 0.0
    %1030 = vmatpush1.msra.mxu0 0.0
    %1031 = vmatprep.subr.mxu0 0.0
    %1032 = vmatpush1.msra.mxu0 0.0
    %1033 = vmatprep.subr.mxu0 0.0
    %1034 = vmatpush1.msra.mxu0 0.0
    %1035 = vmatprep.subr.mxu0 0.0
    %1036 = vmatpush1.msra.mxu0 0.0
    %1037 = vmatprep.subr.mxu0 0.0
    %1038 = vmatpush1.msra.mxu0 0.0
    %1039 = vmatprep.mubr.f32.mxu0 0.0
    %1040 = vmatmul.mubr.f32.gmra.mrb[0].mxu0 %v973
    %v1041 = vpop.f32.mrb[0].mxu0
    %v1042 = vadd.f32 0.0, %v1041
    %v1043 = vpop.f32.mrb[0].mxu0
    %1044 = vdwg.mxu0
    %v1045 = vlaneseq
    %v1046 = vshrl.u32 %v1045, 7
    %v1047 = vsub.s32 0, %v1046
    %v1048 = vrot.slane %v1042, %v1047
    %v1049 = vmul.f32 %v832, %v1048
    %v1050 = vmul.f32 %v833, %v1048
    %v1051 = vmul.f32 %v834, %v1048
    %v1052 = vmul.f32 %v835, %v1048
    %v1053 = vlaneseq
    %v1054 = vshrl.u32 %v1053, 7
    %v1055 = vsub.s32 1, %v1054
    %v1056 = vrot.slane %v1042, %v1055
    %v1057 = vadd.f32 %v1049, %v1056
    %v1058 = vadd.f32 %v1050, %v1056
    %v1059 = vadd.f32 %v1051, %v1056
    %v1060 = vadd.f32 %v1052, %v1056
    %v1061 = vadd.f32 %v1057, %v61
    %v1062 = vadd.f32 %v1058, %v62
    %v1063 = vadd.f32 %v1059, %v63
    %v1064 = vadd.f32 %v1060, %v64
    %v1065 = vmax.f32 %v1061, 0.0
    %v1066 = vmax.f32 %v1062, 0.0
    %v1067 = vmax.f32 %v1063, 0.0
    %v1068 = vmax.f32 %v1064, 0.0
    %1069 = vst [vmem:[#allocation7] sm:$0xff] %v1065
    %1070 = vst [vmem:[#allocation7 + $0x8] sm:$0xff] %v1066
    %1071 = vst [vmem:[#allocation7 + $0x10] sm:$0xff] %v1067
    %1072 = vst [vmem:[#allocation7 + $0x18] sm:$0xff] %v1068
    // Predicated region
    $region46: #{tpu_custom_call.1} parent=1 // pred_check
      _
    $region47: #{tpu_custom_call.1} parent=1 // pred_check_branch
      %1074 = sbr.rel (0) target = $region49
    $region48: #{tpu_custom_call.1} parent=1 // pred_region
      %s1076 = ssub.s32 512, 512
      %1077 = vsyncadd [#allocation4], %s1076
      %s1078 = sshll.u32 [#allocation7], 4
      %s1079 = int_to_ptr.vmem [resolvable:$true] %s1078
      %1084 = dma.vmem_to_hbm [thread:$0]  %s1079, 512, %s9, [#allocation4], 128, 128, 8
    $region49: #{tpu_custom_call.1} parent=1 // pred_fallthru
      _
    // Predicated region
    $region50: #{tpu_custom_call.1} parent=1 // pred_check
      _
    $region51: #{tpu_custom_call.1} parent=1 // pred_check_branch
      %1086 = sbr.rel (0) target = $region53
    $region52: #{tpu_custom_call.1} parent=1 // pred_region
      %1087 = dma.done [#allocation4], 512
    $region53: #{tpu_custom_call.1} parent=1 // pred_fallthru
      _
    %1088 = vsyncpa [#allocation3], 1
    %1089 = vsyncpa [#allocation6], 1
    %1090 = vsyncpa [#allocation4], 1

</llo_original>
